<compile_context>
chip_gen: v7x
topology: tpu7x:2x2x1
jax: 0.10.0
libtpu: 0.0.40
codegen_flags: <defaults>
</compile_context>

<pallas_src>
import functools
import math

import jax
import jax.numpy as jnp
from jax import lax
from jax.experimental import pallas as pl
from jax.experimental.pallas import tpu as pltpu


# Per-input-half VMEM tile budget (bytes).  Pallas double-buffers each operand,
# so steady-state working set ~= 2*(2*half + out) ~= 6 * budget = ~12 MiB,
# which fits even v5e's 16 MiB default scoped limit; we still raise the limit
# below for headroom on v6e/v7x.
_TILE_BUDGET = 2 * 1024 * 1024
_VMEM_LIMIT = 64 * 1024 * 1024


def _sublane_pack(dtype) -> int:
    """Rows per packed sublane tile: 8 for 32-bit, 16 for bf16, 32 for 8-bit."""
    itemsize = jnp.dtype(dtype).itemsize
    return max(8, 32 // max(itemsize, 1))


def _glu_split_kernel(a_ref, g_ref, o_ref):
    # Fast path: the two halves arrive as separately-DMA'd, aligned VMEM tiles.
    a = a_ref[...].astype(jnp.float32)
    g = g_ref[...].astype(jnp.float32)
    o_ref[...] = (a * jax.nn.sigmoid(g)).astype(o_ref.dtype)


def _glu_fused_kernel(x_ref, o_ref, *, axis):
    # Fallback: whole 2C slab in one tile, split by value slicing in-kernel.
    c = o_ref.shape[axis]
    x = x_ref[...].astype(jnp.float32)
    a = lax.slice_in_dim(x, 0, c, axis=axis)
    g = lax.slice_in_dim(x, c, 2 * c, axis=axis)
    o_ref[...] = (a * jax.nn.sigmoid(g)).astype(o_ref.dtype)


def _compiler_params(n_grid_axes):
    return pltpu.CompilerParams(
        dimension_semantics=("parallel",) * n_grid_axes,
        vmem_limit_bytes=_VMEM_LIMIT,
    )


def _glu_last_axis(x2: jax.Array, c: int, itemsize: int, pack: int) -> jax.Array:
    """GLU on a 2-D view (rows, 2C) split along the last (lane) axis."""
    rows, two_c = x2.shape
    out_shape = jax.ShapeDtypeStruct((rows, c), x2.dtype)

    if c % 128 == 0:
        # Fast path: two lane-aligned in_specs on the same array.
        tile_c = 128
        for cand in (1024, 512, 256):
            if c % cand == 0:
                tile_c = cand
                break
        grid_c = c // tile_c
        gate_off = grid_c  # == c // tile_c blocks

        tile_rows = max(pack, _TILE_BUDGET // (tile_c * itemsize))
        if tile_rows >= rows:
            tile_rows = rows
        else:
            tile_rows -= tile_rows % pack
        grid_r = pl.cdiv(rows, tile_rows)

        # Keep >=2 grid steps when possible so both TensorCores get work.
        if grid_r == 1 and grid_c == 1 and rows >= 2 * pack:
            tile_rows = max(pack, (rows // 2) - ((rows // 2) % pack))
            grid_r = pl.cdiv(rows, tile_rows)

        return pl.pallas_call(
            _glu_split_kernel,
            out_shape=out_shape,
            grid_spec=pltpu.PrefetchScalarGridSpec(
                num_scalar_prefetch=0,
                grid=(grid_r, grid_c),
                in_specs=[
                    pl.BlockSpec((tile_rows, tile_c), lambda i, j: (i, j)),
                    pl.BlockSpec((tile_rows, tile_c),
                                 lambda i, j: (i, j + gate_off)),
                ],
                out_specs=pl.BlockSpec((tile_rows, tile_c), lambda i, j: (i, j)),
            ),
            compiler_params=_compiler_params(2),
        )(x2, x2)

    # Fallback (C not a multiple of 128): full 2C row per tile, slice in-kernel.
    tile_rows = max(pack, _TILE_BUDGET // (two_c * itemsize))
    if tile_rows >= rows:
        tile_rows = rows
    else:
        tile_rows -= tile_rows % pack
    grid_r = pl.cdiv(rows, tile_rows)

    return pl.pallas_call(
        functools.partial(_glu_fused_kernel, axis=1),
        out_shape=out_shape,
        grid_spec=pltpu.PrefetchScalarGridSpec(
            num_scalar_prefetch=0,
            grid=(grid_r,),
            in_specs=[pl.BlockSpec((tile_rows, two_c), lambda i: (i, 0))],
            out_specs=pl.BlockSpec((tile_rows, c), lambda i: (i, 0)),
        ),
        compiler_params=_compiler_params(1),
    )(x2)


def _glu_middle_axis(x3: jax.Array, c: int, itemsize: int, pack: int) -> jax.Array:
    """GLU on a 3-D view (pre, 2C, post) split along the middle axis."""
    pre, two_c, post = x3.shape
    out_shape = jax.ShapeDtypeStruct((pre, c, post), x3.dtype)

    # Lane (last) axis: keep it large and lane-dense.
    tile_t = post if post <= 512 else 512
    grid_t = pl.cdiv(post, tile_t)

    if c % 8 == 0:
        # Fast path: two in_specs offset by C along the channel (sublane) axis.
        tile_c = c
        while tile_c * tile_t * itemsize > _TILE_BUDGET and tile_c % 16 == 0:
            tile_c //= 2
        grid_c = c // tile_c
        gate_off = grid_c  # == c // tile_c blocks

        per_half = tile_c * tile_t * itemsize
        tile_p = max(1, min(pre, _TILE_BUDGET // per_half))
        grid_p = pl.cdiv(pre, tile_p)

        # Keep >=2 grid steps when possible so both TensorCores get work.
        if grid_p == 1 and grid_c == 1 and grid_t == 1 and pre >= 2:
            tile_p = pl.cdiv(pre, 2)
            grid_p = pl.cdiv(pre, tile_p)

        return pl.pallas_call(
            _glu_split_kernel,
            out_shape=out_shape,
            grid_spec=pltpu.PrefetchScalarGridSpec(
                num_scalar_prefetch=0,
                grid=(grid_p, grid_c, grid_t),
                in_specs=[
                    pl.BlockSpec((tile_p, tile_c, tile_t),
                                 lambda p, cb, t: (p, cb, t)),
                    pl.BlockSpec((tile_p, tile_c, tile_t),
                                 lambda p, cb, t: (p, cb + gate_off, t)),
                ],
                out_specs=pl.BlockSpec((tile_p, tile_c, tile_t),
                                       lambda p, cb, t: (p, cb, t)),
            ),
            compiler_params=_compiler_params(3),
        )(x3, x3)

    # Fallback (C not a multiple of 8): full 2C channel slab, slice in-kernel.
    per_row = two_c * tile_t * itemsize
    tile_p = max(1, min(pre, _TILE_BUDGET // per_row))
    grid_p = pl.cdiv(pre, tile_p)

    return pl.pallas_call(
        functools.partial(_glu_fused_kernel, axis=1),
        out_shape=out_shape,
        grid_spec=pltpu.PrefetchScalarGridSpec(
            num_scalar_prefetch=0,
            grid=(grid_p, grid_t),
            in_specs=[pl.BlockSpec((tile_p, two_c, tile_t),
                                   lambda p, t: (p, 0, t))],
            out_specs=pl.BlockSpec((tile_p, c, tile_t),
                                   lambda p, t: (p, 0, t)),
        ),
        compiler_params=_compiler_params(2),
    )(x3)


def glu_pallas(x: jax.Array, dim: int) -> jax.Array:
    """GLU along `dim` (torch.chunk semantics), no wrapper-side transposes."""
    ndim = x.ndim
    dim = dim % ndim
    two_c = x.shape[dim]
    assert two_c % 2 == 0, "GLU split axis must be even"
    c = two_c // 2

    pre = math.prod(x.shape[:dim])
    post = math.prod(x.shape[dim + 1:])
    out_full_shape = x.shape[:dim] + (c,) + x.shape[dim + 1:]

    itemsize = jnp.dtype(x.dtype).itemsize
    pack = _sublane_pack(x.dtype)

    if post == 1:
        # Split axis is (effectively) the last axis: 2-D (rows, 2C) view.
        out = _glu_last_axis(x.reshape(pre, two_c), c, itemsize, pack)
    else:
        # Split axis is an interior axis: 3-D (pre, 2C, post) view; the large
        # trailing `post` axis stays the lane axis (no transpose).
        out = _glu_middle_axis(x.reshape(pre, two_c, post), c, itemsize, pack)

    return out.reshape(out_full_shape)


if __name__ == "__main__":
    key = jax.random.PRNGKey(0)

    # Conformer-style usage: GLU(dim=1) on (B, 2*C, T) after a pointwise conv.
    B, C, T = 2, 32, 8
    x = jax.random.normal(key, (B, 2 * C, T), dtype=jnp.float32)
    out = jax.block_until_ready(glu_pallas(x, dim=1))
    outs_ref, gate_ref = jnp.split(x, 2, axis=1)
    ref = outs_ref * jax.nn.sigmoid(gate_ref)
    assert out.shape == (B, C, T)
    assert jnp.allclose(out, ref, atol=1e-6, rtol=1e-6)

    # Also exercise the last-axis (dim=-1) lane-aligned fast path.
    y = jax.random.normal(jax.random.PRNGKey(0), (16, 256), dtype=jnp.float32)
    out2 = jax.block_until_ready(glu_pallas(y, dim=-1))
    a_ref, g_ref = jnp.split(y, 2, axis=-1)
    ref2 = a_ref * jax.nn.sigmoid(g_ref)
    assert out2.shape == (16, 128)
    assert jnp.allclose(out2, ref2, atol=1e-6, rtol=1e-6)

    print("KERNEL_OK")
</pallas_src>

<mosaic_0001>
module attributes {stable_mosaic.version = 11 : i64} {
  func.func @_glu_split_kernel(%arg0: i32, %arg1: i32, %arg2: i32, %arg3: memref<1x32x8xf32, #tpu.memory_space<vmem>>, %arg4: memref<1x32x8xf32, #tpu.memory_space<vmem>>, %arg5: memref<1x32x8xf32, #tpu.memory_space<vmem>>) attributes {dimension_semantics = [#tpu.dimension_semantics<parallel>, #tpu.dimension_semantics<parallel>, #tpu.dimension_semantics<parallel>], iteration_bounds = array<i64: 2, 1, 1>, scalar_prefetch = 0 : i64, scratch_operands = 0 : i64, tpu.core_type = #tpu.core_type<tc>, window_params = [{transform_indices = @transform_0, window_bounds = array<i64: 1, 32, 8>}, {transform_indices = @transform_1, window_bounds = array<i64: 1, 32, 8>}, {transform_indices = @transform_2, window_bounds = array<i64: 1, 32, 8>}]} {
    %c0 = arith.constant 0 : index
    %c0_0 = arith.constant 0 : index
    %c0_1 = arith.constant 0 : index
    %0 = vector.load %arg3[%c0, %c0_0, %c0_1] : memref<1x32x8xf32, #tpu.memory_space<vmem>>, vector<1x32x8xf32>
    %c0_2 = arith.constant 0 : index
    %c0_3 = arith.constant 0 : index
    %c0_4 = arith.constant 0 : index
    %1 = vector.load %arg4[%c0_2, %c0_3, %c0_4] : memref<1x32x8xf32, #tpu.memory_space<vmem>>, vector<1x32x8xf32>
    %2 = arith.negf %1 : vector<1x32x8xf32>
    %3 = math.exp %2 : vector<1x32x8xf32>
    %cst = arith.constant 1.000000e+00 : f32
    %4 = vector.broadcast %cst : f32 to vector<1x32x8xf32>
    %5 = arith.addf %4, %3 : vector<1x32x8xf32>
    %6 = arith.divf %4, %5 : vector<1x32x8xf32>
    %7 = arith.mulf %0, %6 : vector<1x32x8xf32>
    %c0_5 = arith.constant 0 : index
    %c0_6 = arith.constant 0 : index
    %c0_7 = arith.constant 0 : index
    %8 = vector.load %arg5[%c0_5, %c0_6, %c0_7] : memref<1x32x8xf32, #tpu.memory_space<vmem>>, vector<1x32x8xf32>
    tpu.vector_store %arg5[%c0_5, %c0_6, %c0_7], %7 {strides = array<i32>} : memref<1x32x8xf32, #tpu.memory_space<vmem>>, vector<1x32x8xf32>,
    return
  }
  func.func @transform_0(%arg0: i32, %arg1: i32, %arg2: i32) -> (i32, i32, i32) {
    %c0_i32 = arith.constant 0 : i32
    return %arg0, %arg1, %arg2 : i32, i32, i32
  }
  func.func @transform_1(%arg0: i32, %arg1: i32, %arg2: i32) -> (i32, i32, i32) {
    %c1_i32 = arith.constant 1 : i32
    %0 = arith.addi %arg1, %c1_i32 : i32
    %c0_i32 = arith.constant 0 : i32
    return %arg0, %0, %arg2 : i32, i32, i32
  }
  func.func @transform_2(%arg0: i32, %arg1: i32, %arg2: i32) -> (i32, i32, i32) {
    %c0_i32 = arith.constant 0 : i32
    return %arg0, %arg1, %arg2 : i32, i32, i32
  }
}

</mosaic_0001>

<llo_original>
// kernel: tpu_custom_call.1
$region0: #{tpu_custom_call.1}
  #allocation0 [shape = 'u32[]', space=smem, size = 0x4, offset = 0x4, fixed_abs, tag = 'smem constant byte address 0x4 - core index']
  #allocation1 [shape = 'u32[144,128]{1,0:T(1,128)}', space=vmem, size = 0x12000, scoped, tag = 'internal scratch']
  %s0 = inlined_call_operand.hbm [shape: f32[2,64,8], index: 0, kind: input, shape index: {}]
  %s1 = inlined_call_operand.hbm [shape: f32[2,64,8], index: 1, kind: input, shape index: {}]
  %s2 = inlined_call_operand.hbm [shape: f32[2,32,8], index: 2, kind: output, shape index: {}]
  %s3 = sld [smem:[#allocation0]]
  $region49: #{tpu_custom_call.1} parent=0
    _
  %s5 = ssub.s32 1, %s3
  %s6 = scalar_select 0, %s5, %s3
  $region1: #{tpu_custom_call.1} parent=0
    #allocation2 [shape = 'u8[32768]{0}', space=vmem, size = 0x8000, scoped, tag = 'input window, operand 0']
    #allocation3 [shape = 's32[2]{0}', space=sflag, size = 0x8, scoped, tag = 'scoped memory for tpu_custom_call.1']
    #allocation4 [shape = 's32[2]{0}', space=sflag, size = 0x8, scoped, tag = 'scoped memory for tpu_custom_call.1']
    #allocation5 [shape = 'u8[32768]{0}', space=vmem, size = 0x8000, scoped, tag = 'input window, operand 1']
    #allocation6 [shape = 's32[2]{0}', space=sflag, size = 0x8, scoped, tag = 'scoped memory for tpu_custom_call.1']
    #allocation7 [shape = 'u8[32768]{0}', space=vmem, size = 0x8000, scoped, tag = 'output window, operand 0']
    %7 = vsyncpa [#allocation3], 0
    %s8 = scalar_lea.sflag [#allocation3], 1
    %9 = vsyncpa %s8, 0
    %10 = vsyncpa [#allocation6], 0
    %s11 = scalar_lea.sflag [#allocation6], 1
    %12 = vsyncpa %s11, 0
    %13 = vsyncpa [#allocation4], 0
    %s14 = scalar_lea.sflag [#allocation4], 1
    %15 = vsyncpa %s14, 0
    loop: start=0, step=1, limit=4
    $region2: #{tpu_custom_call.1} parent=1 // loop_pre_header
      _
    $region3: #{tpu_custom_call.1} parent=1 // loop_header
      %s17 = sphi 0, %s21
      %p18 = scmp.ge.s32.totalorder %s17, 4
      %s24 = sphi 0, %s43
      %s25 = sphi 0, %s39
      %s26 = sphi 0, %s35
      %s27 = sphi 0, %s24
      %s28 = sphi 0, %s25
      %s29 = sphi 0, %s26
      %s30 = sphi 0, %s27
      %s31 = sphi 0, %s28
      %s32 = sphi 0, %s29
      %s50 = sphi 0, %s52
      %s53 = sphi 0, %s50
      %s54 = sphi 0, %s53
      %s70 = sphi 0, %s54
      %s82 = sphi 0, %s84
      %s85 = sphi 0, %s82
      %s86 = sphi 0, %s85
      %s102 = sphi 0, %s86
      %s112 = sphi 0, %s114
      %s115 = sphi 0, %s112
      %s116 = sphi 0, %s115
      %s132 = sphi 0, %s116
    $region4: #{tpu_custom_call.1} parent=1 // loop_header_branch
      %20 = sbr.rel (%p18) target = $region8
    $region5: #{tpu_custom_call.1} parent=1 // loop_body
      %s22 = ssub.s32 %s17, 1
      %s23 = ssub.s32 %s17, 2
      %s33 = sadd.s32 1, %s26
      %p34 = scmp.ge.s32.totalorder %s33, 1
      %s35 = scalar_select %p34, 0, %s33
      %s36 = sadd.s32 1, %s25
      %s37 = scalar_select %p34, %s36, %s25
      %p38 = scmp.ge.s32.totalorder %s37, 1
      %s39 = scalar_select %p38, 0, %s37
      %s40 = sadd.s32 1, %s24
      %s41 = scalar_select %p38, %s40, %s24
      %p42 = scmp.ge.s32.totalorder %s41, 2
      %s43 = scalar_select %p42, 0, %s41
      %s44 = ssub.s32 %s24, %s43
      %s45 = ssub.s32 %s25, %s39
      %s46 = sor.u32 %s44, %s45
      %s47 = ssub.s32 %s26, %s35
      %s48 = sor.u32 %s46, %s47
      %p49 = scmp.eq.s32.totalorder %s48, 0
      %s51 = sadd.s32 %s50, 1
      %s52 = scalar_select %p49, %s50, %s51
      %p55 = pneg %p49
      %p56 = scmp.eq.s32.totalorder %s17, 1
      %p57 = por %p55, %p56
      %p58 = scmp.ne.s32.totalorder %s50, %s53
      %p59 = scmp.eq.s32.totalorder %s17, 0
      %p60 = por %p58, %p59
      %p61 = scmp.ne.s32.totalorder %s50, %s53
      %p62 = scmp.eq.s32.totalorder %s22, 1
      %p63 = por %p61, %p62
      %p64 = scmp.ne.s32.totalorder %s53, %s54
      %p65 = scmp.eq.s32.totalorder %s22, 0
      %p66 = por %p64, %p65
      %p67 = scmp.ne.s32.totalorder %s53, %s54
      %p68 = scmp.eq.s32.totalorder %s23, 1
      %p69 = por %p67, %p68
      %p71 = scmp.ne.s32.totalorder %s54, %s70
      %p72 = scmp.eq.s32.totalorder %s23, 0
      %p73 = por %p71, %p72
      %s74 = sadd.s32 %s25, 1
      %s75 = sadd.s32 %s39, 1
      %s76 = ssub.s32 %s24, %s43
      %s77 = ssub.s32 %s74, %s75
      %s78 = sor.u32 %s76, %s77
      %s79 = ssub.s32 %s26, %s35
      %s80 = sor.u32 %s78, %s79
      %p81 = scmp.eq.s32.totalorder %s80, 0
      %s83 = sadd.s32 %s82, 1
      %s84 = scalar_select %p81, %s82, %s83
      %p87 = pneg %p81
      %p88 = scmp.eq.s32.totalorder %s17, 1
      %p89 = por %p87, %p88
      %p90 = scmp.ne.s32.totalorder %s82, %s85
      %p91 = scmp.eq.s32.totalorder %s17, 0
      %p92 = por %p90, %p91
      %p93 = scmp.ne.s32.totalorder %s82, %s85
      %p94 = scmp.eq.s32.totalorder %s22, 1
      %p95 = por %p93, %p94
      %p96 = scmp.ne.s32.totalorder %s85, %s86
      %p97 = scmp.eq.s32.totalorder %s22, 0
      %p98 = por %p96, %p97
      %p99 = scmp.ne.s32.totalorder %s85, %s86
      %p100 = scmp.eq.s32.totalorder %s23, 1
      %p101 = por %p99, %p100
      %p103 = scmp.ne.s32.totalorder %s86, %s102
      %p104 = scmp.eq.s32.totalorder %s23, 0
      %p105 = por %p103, %p104
      %s106 = ssub.s32 %s24, %s43
      %s107 = ssub.s32 %s25, %s39
      %s108 = sor.u32 %s106, %s107
      %s109 = ssub.s32 %s26, %s35
      %s110 = sor.u32 %s108, %s109
      %p111 = scmp.eq.s32.totalorder %s110, 0
      %s113 = sadd.s32 %s112, 1
      %s114 = scalar_select %p111, %s112, %s113
      %p117 = pneg %p111
      %p118 = scmp.eq.s32.totalorder %s17, 1
      %p119 = por %p117, %p118
      %p120 = scmp.ne.s32.totalorder %s112, %s115
      %p121 = scmp.eq.s32.totalorder %s17, 0
      %p122 = por %p120, %p121
      %p123 = scmp.ne.s32.totalorder %s112, %s115
      %p124 = scmp.eq.s32.totalorder %s22, 1
      %p125 = por %p123, %p124
      %p126 = scmp.ne.s32.totalorder %s115, %s116
      %p127 = scmp.eq.s32.totalorder %s22, 0
      %p128 = por %p126, %p127
      %p129 = scmp.ne.s32.totalorder %s115, %s116
      %p130 = scmp.eq.s32.totalorder %s23, 1
      %p131 = por %p129, %p130
      %p133 = scmp.ne.s32.totalorder %s116, %s132
      %p134 = scmp.eq.s32.totalorder %s23, 0
      %p135 = por %p133, %p134
      %p136 = scmp.le.s32.totalorder 1, %s17
      %p137 = scmp.lt.s32.totalorder %s17, 3
      %p138 = pnand %p136, %p137
      %p139 = pneg %p138
      // Predicated region
      $region9: #{tpu_custom_call.1} parent=5 // pred_check
        _
      $region10: #{tpu_custom_call.1} parent=5 // pred_check_branch
        %141 = sbr.rel (%p138) target = $region12
      $region11: #{tpu_custom_call.1} parent=5 // pred_region
        %s142 = ssub.s32 %s17, 1
      $region12: #{tpu_custom_call.1} parent=5 // pred_fallthru
        _
      %p143 = scmp.lt.s32.totalorder %s17, 2
      // Predicated region
      $region13: #{tpu_custom_call.1} parent=5 // pred_check
        %p144 = pneg %p143
      $region14: #{tpu_custom_call.1} parent=5 // pred_check_branch
        %146 = sbr.rel (%p144) target = $region16
      $region15: #{tpu_custom_call.1} parent=5 // pred_region
        // Predicated region
        $region17: #{tpu_custom_call.1} parent=15 // pred_check
          %p147 = pneg %p60
        $region18: #{tpu_custom_call.1} parent=15 // pred_check_branch
          %149 = sbr.rel (%p147) target = $region20
        $region19: #{tpu_custom_call.1} parent=15 // pred_region
          %s150 = sand.u32 %s50, 1
          %s151 = scalar_lea.sflag [#allocation3], %s150
          %s152 = sand.u32 %s50, 1
          %s153 = smul.addr %s152, 32
          %s154 = scalar_lea.vmem [#allocation2], %s153
          %s155 = smul.u32 4, %s25
          %s157 = ssub.s32 512, 512
          %158 = vsyncadd %s151, %s157
          %s159 = sadd.s32 %s26, %s155
          %s160 = smul.addr %s24, 8
          %s161 = sadd.s32 %s159, %s160
          %s162 = smul.addr %s161, 128
          %s163 = scalar_lea.hbm %s0, %s162
          %s164 = sshll.u32 %s154, 4
          %s165 = int_to_ptr.vmem [resolvable:$true] %s164
          %170 = dma.hbm_to_vmem [thread:$0]  %s163, 512, %s165, %s151, 128, 128, 8
        $region20: #{tpu_custom_call.1} parent=15 // pred_fallthru
          _
        // Predicated region
        $region21: #{tpu_custom_call.1} parent=15 // pred_check
          %p171 = pneg %p92
        $region22: #{tpu_custom_call.1} parent=15 // pred_check_branch
          %173 = sbr.rel (%p171) target = $region24
        $region23: #{tpu_custom_call.1} parent=15 // pred_region
          %s174 = sand.u32 %s82, 1
          %s175 = scalar_lea.sflag [#allocation6], %s174
          %s176 = sand.u32 %s82, 1
          %s177 = smul.addr %s176, 32
          %s178 = scalar_lea.vmem [#allocation5], %s177
          %s179 = sadd.s32 %s25, 1
          %s180 = smul.u32 4, %s179
          %s182 = ssub.s32 512, 512
          %183 = vsyncadd %s175, %s182
          %s184 = sadd.s32 %s26, %s180
          %s185 = smul.addr %s24, 8
          %s186 = sadd.s32 %s184, %s185
          %s187 = smul.addr %s186, 128
          %s188 = scalar_lea.hbm %s1, %s187
          %s189 = sshll.u32 %s178, 4
          %s190 = int_to_ptr.vmem [resolvable:$true] %s189
          %195 = dma.hbm_to_vmem [thread:$0]  %s188, 512, %s190, %s175, 128, 128, 8
        $region24: #{tpu_custom_call.1} parent=15 // pred_fallthru
          _
      $region16: #{tpu_custom_call.1} parent=5 // pred_fallthru
        _
      %p196 = scmp.le.s32.totalorder 1, %s17
      %p197 = scmp.lt.s32.totalorder %s17, 3
      %p198 = pnand %p196, %p197
      %p199 = pneg %p198
      // Predicated region
      $region25: #{tpu_custom_call.1} parent=5 // pred_check
        _
      $region26: #{tpu_custom_call.1} parent=5 // pred_check_branch
        %201 = sbr.rel (%p198) target = $region28
      $region27: #{tpu_custom_call.1} parent=5 // pred_region
        %s202 = ssub.s32 %s17, 1
        %s203 = sand.u32 %s53, 1
        %s204 = scalar_lea.sflag [#allocation3], %s203
        %s205 = sand.u32 %s53, 1
        %s206 = smul.addr %s205, 32
        %s207 = scalar_lea.vmem [#allocation2], %s206
        // Predicated region
        $region29: #{tpu_custom_call.1} parent=27 // pred_check
          %p208 = pneg %p66
        $region30: #{tpu_custom_call.1} parent=27 // pred_check_branch
          %210 = sbr.rel (%p208) target = $region32
        $region31: #{tpu_custom_call.1} parent=27 // pred_region
          %211 = dma.done %s204, 512
        $region32: #{tpu_custom_call.1} parent=27 // pred_fallthru
          _
        %s212 = sand.u32 %s85, 1
        %s213 = scalar_lea.sflag [#allocation6], %s212
        %s214 = sand.u32 %s85, 1
        %s215 = smul.addr %s214, 32
        %s216 = scalar_lea.vmem [#allocation5], %s215
        // Predicated region
        $region33: #{tpu_custom_call.1} parent=27 // pred_check
          %p217 = pneg %p98
        $region34: #{tpu_custom_call.1} parent=27 // pred_check_branch
          %219 = sbr.rel (%p217) target = $region36
        $region35: #{tpu_custom_call.1} parent=27 // pred_region
          %220 = dma.done %s213, 512
        $region36: #{tpu_custom_call.1} parent=27 // pred_fallthru
          _
        %s221 = sand.u32 %s53, 1
        %s222 = scalar_lea.sflag [#allocation3], %s221
        %s223 = sand.u32 %s53, 1
        %s224 = smul.addr %s223, 32
        %s225 = scalar_lea.vmem [#allocation2], %s224
        %p226 = pneg %p66
        %p227 = pneg %p63
        %s228 = sand.u32 %s85, 1
        %s229 = scalar_lea.sflag [#allocation6], %s228
        %s230 = sand.u32 %s85, 1
        %s231 = smul.addr %s230, 32
        %s232 = scalar_lea.vmem [#allocation5], %s231
        %p233 = pneg %p98
        %p234 = pneg %p95
        %p235 = pneg %p128
        %p236 = pneg %p125
        %s237 = sand.u32 %s115, 1
        %s238 = scalar_lea.sflag [#allocation4], %s237
        %s239 = sand.u32 %s115, 1
        %s240 = smul.addr %s239, 32
        %s241 = scalar_lea.vmem [#allocation7], %s240
        %s242 = smul.u32 4, %s28
        %s243 = sadd.s32 %s28, 1
        %s244 = smul.u32 4, %s243
        %s245 = smul.u32 4, %s28
        %v246 = vld [vmem:[%s207] sm:$0xff]
        %v247 = vld [vmem:[%s207 + $0x8] sm:$0xff]
        %v248 = vld [vmem:[%s207 + $0x10] sm:$0xff]
        %v249 = vld [vmem:[%s207 + $0x18] sm:$0xff]
        %v250 = vld [vmem:[%s216] sm:$0xff]
        %v251 = vld [vmem:[%s216 + $0x8] sm:$0xff]
        %v252 = vld [vmem:[%s216 + $0x10] sm:$0xff]
        %v253 = vld [vmem:[%s216 + $0x18] sm:$0xff]
        %v254 = vxor.u32 %v250, 2147483648
        %v255 = vxor.u32 %v251, 2147483648
        %v256 = vxor.u32 %v252, 2147483648
        %v257 = vxor.u32 %v253, 2147483648
        %v258 = vmul.f32 %v254, 1.442695
        %v259 = vpow.pop %v258
        %v260 = vmul.f32 %v255, 1.442695
        %v261 = vpow.pop %v260
        %v262 = vmul.f32 %v256, 1.442695
        %v263 = vpow.pop %v262
        %v264 = vmul.f32 %v257, 1.442695
        %v265 = vpow.pop %v264
        %v266 = vadd.f32 %v259, 1.0
        %v267 = vadd.f32 %v261, 1.0
        %v268 = vadd.f32 %v263, 1.0
        %v269 = vadd.f32 %v265, 1.0
        %v270 = vrcp.pop %v266
        %v271 = vmul.f32 1.0, %v270
        %v272 = vrcp.pop %v267
        %v273 = vmul.f32 1.0, %v272
        %v274 = vrcp.pop %v268
        %v275 = vmul.f32 1.0, %v274
        %v276 = vrcp.pop %v269
        %v277 = vmul.f32 1.0, %v276
        %v278 = vmul.f32 %v246, %v271
        %v279 = vmul.f32 %v247, %v273
        %v280 = vmul.f32 %v248, %v275
        %v281 = vmul.f32 %v249, %v277
        %vm282 = vcmask 64512
        %283 = vst.msk [vmem:[%s241] sm:$0xff] %vm282, %v278
        %284 = vst.msk [vmem:[%s241 + $0x8] sm:$0xff] %vm282, %v279
        %285 = vst.msk [vmem:[%s241 + $0x10] sm:$0xff] %vm282, %v280
        %286 = vst.msk [vmem:[%s241 + $0x18] sm:$0xff] %vm282, %v281
        %s287 = sand.u32 %s115, 1
        %s288 = scalar_lea.sflag [#allocation4], %s287
        %s289 = sand.u32 %s115, 1
        %s290 = smul.addr %s289, 32
        %s291 = scalar_lea.vmem [#allocation7], %s290
        // Predicated region
        $region37: #{tpu_custom_call.1} parent=27 // pred_check
          %p292 = pneg %p125
        $region38: #{tpu_custom_call.1} parent=27 // pred_check_branch
          %294 = sbr.rel (%p292) target = $region40
        $region39: #{tpu_custom_call.1} parent=27 // pred_region
          %s295 = smul.u32 4, %s28
          %s297 = ssub.s32 512, 512
          %298 = vsyncadd %s288, %s297
          %s299 = sadd.s32 %s29, %s295
          %s300 = smul.addr %s27, 4
          %s301 = sadd.s32 %s299, %s300
          %s302 = smul.addr %s301, 128
          %s303 = scalar_lea.hbm %s2, %s302
          %s304 = sshll.u32 %s291, 4
          %s305 = int_to_ptr.vmem [resolvable:$true] %s304
          %310 = dma.vmem_to_hbm [thread:$0]  %s305, 512, %s303, %s288, 128, 128, 8
        $region40: #{tpu_custom_call.1} parent=27 // pred_fallthru
          _
      $region28: #{tpu_custom_call.1} parent=5 // pred_fallthru
        _
      %p311 = scmp.le.s32.totalorder 2, %s17
      // Predicated region
      $region41: #{tpu_custom_call.1} parent=5 // pred_check
        %p312 = pneg %p311
      $region42: #{tpu_custom_call.1} parent=5 // pred_check_branch
        %314 = sbr.rel (%p312) target = $region44
      $region43: #{tpu_custom_call.1} parent=5 // pred_region
        %s315 = ssub.s32 %s17, 2
        // Predicated region
        $region45: #{tpu_custom_call.1} parent=43 // pred_check
          %p316 = pneg %p131
        $region46: #{tpu_custom_call.1} parent=43 // pred_check_branch
          %318 = sbr.rel (%p316) target = $region48
        $region47: #{tpu_custom_call.1} parent=43 // pred_region
          %s319 = sand.u32 %s116, 1
          %s320 = scalar_lea.sflag [#allocation4], %s319
          %s321 = sand.u32 %s116, 1
          %s322 = smul.addr %s321, 32
          %s323 = scalar_lea.vmem [#allocation7], %s322
          %324 = dma.done %s320, 512
        $region48: #{tpu_custom_call.1} parent=43 // pred_fallthru
          _
      $region44: #{tpu_custom_call.1} parent=5 // pred_fallthru
        _
    $region6: #{tpu_custom_call.1} parent=1 // loop_footer
      %s21 = sadd.s32 1, %s17
    $region7: #{tpu_custom_call.1} parent=1 // loop_footer_branch
      %16 = sbr.rel target = $region3
    $region8: #{tpu_custom_call.1} parent=1 // loop_exit
      _
    %325 = vsyncpa [#allocation3], 1
    %s326 = scalar_lea.sflag [#allocation3], 1
    %327 = vsyncpa %s326, 1
    %328 = vsyncpa [#allocation6], 1
    %s329 = scalar_lea.sflag [#allocation6], 1
    %330 = vsyncpa %s329, 1
    %331 = vsyncpa [#allocation4], 1
    %s332 = scalar_lea.sflag [#allocation4], 1
    %333 = vsyncpa %s332, 1

</llo_original>
